<compile_context>
chip_gen: v5e
topology: v5e:2x2
jax: 0.10.0
libtpu: 0.0.40
codegen_flags: <defaults>
</compile_context>

<pallas_src>
import jax
import jax.numpy as jnp
from jax import lax
from jax.experimental import pallas as pl
from jax.experimental.pallas import tpu as pltpu


_VMEM_SPEC = pl.BlockSpec(memory_space=pltpu.MemorySpace.VMEM)


def _round_up(x, m):
    return ((x + m - 1) // m) * m


# ----------------------------------------------------------------------------
# Fused Pallas kernel: 3x Conv3d (as per-sample MXU matmuls, folded bias)
# + both MLP heads, in one grid-less launch.
# ----------------------------------------------------------------------------
def _fused_kernel(patches_ref, wcpad_ref, w1_ref, w2b_ref, w2o_ref, bm_ref,
                  high_ref, med_ref, low_ref, block_ref, orient_ref,
                  ppad_sc):
    n_batch, ck3, feat = patches_ref.shape          # (N, C*K^3, 64)
    k_pad = ppad_sc.shape[0]                        # 512 (128-aligned contraction)
    h1b = w2b_ref.shape[0]                          # 4*64 = 256 (block-head hidden)
    block_types = block_ref.shape[1]
    num_orient = orient_ref.shape[1]

    # One-time tail of the padded contraction operand:
    #   row ck3      = ones  -> folds the conv bias (column ck3 of wcpad)
    #   rows ck3+1.. = zeros -> alignment padding (guaranteed-zero K padding)
    ppad_sc[ck3:ck3 + 1, :] = jnp.ones((1, feat), jnp.float32)
    ppad_sc[ck3 + 1:, :] = jnp.zeros((k_pad - ck3 - 1, feat), jnp.float32)

    # --- three Conv3d layers: one (3, K_pad) @ (K_pad, 64) matmul per sample,
    # bias folded via the ones-row.  N lands on output sublanes naturally.
    for n in range(n_batch):                        # static unroll; N is tiny here
        ppad_sc[:ck3, :] = patches_ref[n]
        r = jnp.dot(wcpad_ref[...], ppad_sc[...],
                    preferred_element_type=jnp.float32)          # (3, 64)
        high_ref[n:n + 1, :] = r[0:1, :]
        med_ref[n:n + 1, :] = r[1:2, :]
        low_ref[n:n + 1, :] = r[2:3, :]

    # --- both MLP heads; first layers share one (N,64) @ (64,384) matmul ----
    x_low = low_ref[...]                                         # (N, 64)
    h = jnp.dot(x_low, w1_ref[...],
                preferred_element_type=jnp.float32) + bm_ref[0:1, :]
    h = jnp.maximum(h, 0.0)                                      # (N, 384)

    # Second layers as two small dense matmuls on 128-aligned lane slices
    # (h[:, :256] / h[:, 256:]); outputs written directly, no padding.
    block_ref[...] = (
        jnp.dot(h[:, :h1b], w2b_ref[...], preferred_element_type=jnp.float32)
        + bm_ref[1:2, :block_types])
    orient_ref[...] = (
        jnp.dot(h[:, h1b:], w2o_ref[...], preferred_element_type=jnp.float32)
        + bm_ref[2:3, :num_orient])


def hcnn_dqn_forward(x, params):
    """Forward pass equivalent to HCNN_DQN.forward (eval mode)."""
    N, C, D, H, W = x.shape
    D_out = 4
    K = D - 3            # kernel_size = int(((D_out-1)*1 - D + 1)/-1 + 1) = D - 3
    CK3 = C * K ** 3
    F = D_out ** 3       # 64

    block_types = params["w2b"].shape[1]
    num_orient = params["w2o"].shape[1]
    K_pad = params["wcpad"].shape[1]

    # im2col via ONE XLA op.  Feature order is (c, kd, kh, kw), matching the
    # PyTorch Conv3d weight flattening (validated by the self-check below).
    # The reshape only collapses minor dims -> free (no transpose/concat/pad).
    patches = lax.conv_general_dilated_patches(
        x.astype(jnp.float32), (K, K, K), (1, 1, 1), "VALID",
        dimension_numbers=("NCDHW", "OIDHW", "NCDHW")).reshape(N, CK3, F)

    high, med, low, out_block, out_orient = pl.pallas_call(
        _fused_kernel,
        out_shape=(
            jax.ShapeDtypeStruct((N, F), jnp.float32),            # conv high
            jax.ShapeDtypeStruct((N, F), jnp.float32),            # conv med
            jax.ShapeDtypeStruct((N, F), jnp.float32),            # conv low
            jax.ShapeDtypeStruct((N, block_types), jnp.float32),  # head: block
            jax.ShapeDtypeStruct((N, num_orient), jnp.float32),   # head: orient
        ),
        in_specs=[_VMEM_SPEC] * 6,
        out_specs=(_VMEM_SPEC,) * 5,
        scratch_shapes=[pltpu.VMEM((K_pad, F), jnp.float32)],
    )(patches, params["wcpad"], params["w1cat"], params["w2b"],
      params["w2o"], params["bmerged"])

    # Metadata-only reshapes (contiguous views), no post-kernel slicing.
    out_high = high.reshape(N, 1, D_out, D_out, D_out)
    out_med = med.reshape(N, 1, D_out, D_out, D_out)
    out_low = low.reshape(N, 1, D_out, D_out, D_out)
    return out_block, out_orient, out_high, out_med, out_low


# ----------------------------------------------------------------------------
# Parameter construction (HCNN_DQN.__init__ shapes / init), plus the fused /
# padded forms consumed by the Pallas kernel.  nonzero_biases=True deviates
# from the PyTorch zero-bias init on purpose so the folded-bias path is
# actually exercised by the correctness check.
# ----------------------------------------------------------------------------
def make_params(key, block_info_size, D, block_types, num_orient,
                *, nonzero_biases=False):
    D_out = 4
    K = D - 3
    C = block_info_size
    CK3 = C * K ** 3
    F = D_out ** 3
    keys = jax.random.split(key, 14)

    def bias(k, shape):
        if nonzero_biases:
            return 0.05 * jax.random.normal(k, shape, dtype=jnp.float32)
        return jnp.zeros(shape, jnp.float32)

    # Conv3d: xavier_uniform on (1, C, K, K, K).
    fan_in = C * K ** 3
    fan_out = 1 * K ** 3
    bound = (6.0 / (fan_in + fan_out)) ** 0.5
    conv_w_raw = [
        jax.random.uniform(keys[i], (1, C, K, K, K),
                           minval=-bound, maxval=bound, dtype=jnp.float32)
        for i in range(3)  # high, med, low
    ]
    conv_b_raw = [bias(keys[3 + i], (1,)) for i in range(3)]

    # Linear layers: normal(0, 0.02) -- stored as (in, out) = W.T
    def lin(k, n_in, n_out):
        return 0.02 * jax.random.normal(k, (n_in, n_out), dtype=jnp.float32)

    w1b, b1b = lin(keys[6], F, 4 * F), bias(keys[7], (1, 4 * F))
    w2b, b2b = lin(keys[8], 4 * F, block_types), bias(keys[9], (1, block_types))
    w1o, b1o = lin(keys[10], F, 2 * F), bias(keys[11], (1, 2 * F))
    w2o, b2o = lin(keys[12], 2 * F, num_orient), bias(keys[13], (1, num_orient))

    # ---- fused / padded parameters for the Pallas kernel --------------------
    K_pad = _round_up(CK3 + 1, 128)             # +1 bias row, 128-aligned contraction
    wcpad = jnp.zeros((3, K_pad), jnp.float32)
    for r, (w, b) in enumerate(zip(conv_w_raw, conv_b_raw)):
        wcpad = wcpad.at[r, :CK3].set(w.reshape(-1))    # (C, kd, kh, kw) order
        wcpad = wcpad.at[r, CK3].set(b[0])              # folded conv bias

    w1cat = jnp.concatenate([w1b, w1o], axis=1)         # (64, 384)

    H1 = 4 * F + 2 * F                                   # 384
    bmerged = jnp.zeros((3, H1), jnp.float32)
    bmerged = bmerged.at[0, :].set(jnp.concatenate([b1b, b1o], axis=1)[0])
    bmerged = bmerged.at[1, :block_types].set(b2b[0])
    bmerged = bmerged.at[2, :num_orient].set(b2o[0])

    return dict(
        # raw parameters (reference check)
        conv_w_raw=conv_w_raw, conv_b_raw=conv_b_raw,
        w1b=w1b, b1b=b1b, w2b=w2b, b2b=b2b,
        w1o=w1o, b1o=b1o, w2o=w2o, b2o=b2o,
        # fused / padded parameters consumed by the Pallas kernel
        wcpad=wcpad, w1cat=w1cat, bmerged=bmerged,
    )


# ----------------------------------------------------------------------------
# Pure-JAX reference (for correctness check)
# ----------------------------------------------------------------------------
def reference_forward(x, params):
    N = x.shape[0]
    D_out = 4
    dn = ("NCDHW", "OIDHW", "NCDHW")

    def conv(w, b):
        y = lax.conv_general_dilated(
            x, w, window_strides=(1, 1, 1), padding="VALID", dimension_numbers=dn)
        return y + b.reshape(1, 1, 1, 1, 1)

    out_high = conv(params["conv_w_raw"][0], params["conv_b_raw"][0])
    out_med = conv(params["conv_w_raw"][1], params["conv_b_raw"][1])
    out_low = conv(params["conv_w_raw"][2], params["conv_b_raw"][2])

    x_low = out_low.reshape(N, D_out ** 3)
    hb = jnp.maximum(x_low @ params["w1b"] + params["b1b"], 0.0)
    out_block = hb @ params["w2b"] + params["b2b"]
    ho = jnp.maximum(x_low @ params["w1o"] + params["b1o"], 0.0)
    out_orient = ho @ params["w2o"] + params["b2o"]
    return out_block, out_orient, out_high, out_med, out_low


# ----------------------------------------------------------------------------
if __name__ == "__main__":
    # Small shapes consistent with the module:
    #   grid_sizes = (8, 8, 8) -> D = 8, kernel_size = 5, conv output 4x4x4.
    N = 2
    block_info_size = 4      # in_channels
    D = H = W = 8
    block_types = 8
    num_orient = 24

    key = jax.random.PRNGKey(0)
    k_x, k_p = jax.random.split(key)

    x = jax.random.normal(k_x, (N, block_info_size, D, H, W), dtype=jnp.float32)
    # nonzero_biases=True so the folded conv-bias / merged-bias paths are
    # actually exercised (the PyTorch init would zero them).
    params = make_params(k_p, block_info_size, D, block_types, num_orient,
                         nonzero_biases=True)

    fwd = jax.jit(hcnn_dqn_forward)
    outs = jax.block_until_ready(fwd(x, params))

    refs = reference_forward(x, params)
    names = ["out_block", "out_orient", "out_high", "out_med", "out_low"]
    for name, got, ref in zip(names, outs, refs):
        assert got.shape == ref.shape, (name, got.shape, ref.shape)
        assert jnp.allclose(got, ref, atol=5e-4, rtol=5e-4), name

    print("KERNEL_OK")
</pallas_src>

<mosaic_0001>
module attributes {stable_mosaic.version = 11 : i64} {
  func.func @_fused_kernel(%arg0: memref<2x500x64xf32, #tpu.memory_space<vmem>>, %arg1: memref<3x512xf32, #tpu.memory_space<vmem>>, %arg2: memref<64x384xf32, #tpu.memory_space<vmem>>, %arg3: memref<256x8xf32, #tpu.memory_space<vmem>>, %arg4: memref<128x24xf32, #tpu.memory_space<vmem>>, %arg5: memref<3x384xf32, #tpu.memory_space<vmem>>, %arg6: memref<2x64xf32, #tpu.memory_space<vmem>>, %arg7: memref<2x64xf32, #tpu.memory_space<vmem>>, %arg8: memref<2x64xf32, #tpu.memory_space<vmem>>, %arg9: memref<2x8xf32, #tpu.memory_space<vmem>>, %arg10: memref<2x24xf32, #tpu.memory_space<vmem>>, %arg11: memref<512x64xf32, #tpu.memory_space<vmem>>) attributes {dimension_semantics = [], scalar_prefetch = 0 : i64, scratch_operands = 1 : i64, tpu.core_type = #tpu.core_type<tc>} {
    %cst = arith.constant 1.000000e+00 : f32
    %0 = vector.broadcast %cst : f32 to vector<1x64xf32>
    %c500 = arith.constant 500 : index
    %c0 = arith.constant 0 : index
    %1 = vector.load %arg11[%c500, %c0] : memref<512x64xf32, #tpu.memory_space<vmem>>, vector<1x64xf32>
    tpu.vector_store %arg11[%c500, %c0], %0 {strides = array<i32>} : memref<512x64xf32, #tpu.memory_space<vmem>>, vector<1x64xf32>,
    %cst_0 = arith.constant 0.000000e+00 : f32
    %2 = vector.broadcast %cst_0 : f32 to vector<11x64xf32>
    %c501 = arith.constant 501 : index
    %c0_1 = arith.constant 0 : index
    %3 = vector.load %arg11[%c501, %c0_1] : memref<512x64xf32, #tpu.memory_space<vmem>>, vector<11x64xf32>
    tpu.vector_store %arg11[%c501, %c0_1], %2 {strides = array<i32>} : memref<512x64xf32, #tpu.memory_space<vmem>>, vector<11x64xf32>,
    %c0_2 = arith.constant 0 : index
    %c0_3 = arith.constant 0 : index
    %c0_4 = arith.constant 0 : index
    %4 = vector.load %arg0[%c0_2, %c0_3, %c0_4] : memref<2x500x64xf32, #tpu.memory_space<vmem>>, vector<1x500x64xf32>
    %5 = vector.shape_cast %4 : vector<1x500x64xf32> to vector<500x64xf32>
    %c0_5 = arith.constant 0 : index
    %c0_6 = arith.constant 0 : index
    %6 = vector.load %arg11[%c0_5, %c0_6] : memref<512x64xf32, #tpu.memory_space<vmem>>, vector<500x64xf32>
    tpu.vector_store %arg11[%c0_5, %c0_6], %5 {strides = array<i32>} : memref<512x64xf32, #tpu.memory_space<vmem>>, vector<500x64xf32>,
    %c0_7 = arith.constant 0 : index
    %c0_8 = arith.constant 0 : index
    %7 = vector.load %arg1[%c0_7, %c0_8] : memref<3x512xf32, #tpu.memory_space<vmem>>, vector<3x512xf32>
    %c0_9 = arith.constant 0 : index
    %c0_10 = arith.constant 0 : index
    %8 = vector.load %arg11[%c0_9, %c0_10] : memref<512x64xf32, #tpu.memory_space<vmem>>, vector<512x64xf32>
    %cst_11 = arith.constant dense<0.000000e+00> : vector<3x64xf32>
    %9 = tpu.matmul %7, %8, %cst_11 {dimension_numbers = #tpu.dot_dimension_numbers<[1], [0], [0], [1], [0, 0, 1, 1], [], []>} : vector<3x512xf32>, vector<512x64xf32>, vector<3x64xf32> -> vector<3x64xf32>
    %10 = vector.extract_strided_slice %9 {offsets = [0, 0], sizes = [1, 64], strides = [1, 1]} : vector<3x64xf32> to vector<1x64xf32>
    %c0_12 = arith.constant 0 : index
    %c0_13 = arith.constant 0 : index
    %11 = vector.load %arg6[%c0_12, %c0_13] : memref<2x64xf32, #tpu.memory_space<vmem>>, vector<1x64xf32>
    tpu.vector_store %arg6[%c0_12, %c0_13], %10 {strides = array<i32>} : memref<2x64xf32, #tpu.memory_space<vmem>>, vector<1x64xf32>,
    %12 = vector.extract_strided_slice %9 {offsets = [1, 0], sizes = [1, 64], strides = [1, 1]} : vector<3x64xf32> to vector<1x64xf32>
    %c0_14 = arith.constant 0 : index
    %c0_15 = arith.constant 0 : index
    %13 = vector.load %arg7[%c0_14, %c0_15] : memref<2x64xf32, #tpu.memory_space<vmem>>, vector<1x64xf32>
    tpu.vector_store %arg7[%c0_14, %c0_15], %12 {strides = array<i32>} : memref<2x64xf32, #tpu.memory_space<vmem>>, vector<1x64xf32>,
    %14 = vector.extract_strided_slice %9 {offsets = [2, 0], sizes = [1, 64], strides = [1, 1]} : vector<3x64xf32> to vector<1x64xf32>
    %c0_16 = arith.constant 0 : index
    %c0_17 = arith.constant 0 : index
    %15 = vector.load %arg8[%c0_16, %c0_17] : memref<2x64xf32, #tpu.memory_space<vmem>>, vector<1x64xf32>
    tpu.vector_store %arg8[%c0_16, %c0_17], %14 {strides = array<i32>} : memref<2x64xf32, #tpu.memory_space<vmem>>, vector<1x64xf32>,
    %c1 = arith.constant 1 : index
    %c0_18 = arith.constant 0 : index
    %c0_19 = arith.constant 0 : index
    %16 = vector.load %arg0[%c1, %c0_18, %c0_19] : memref<2x500x64xf32, #tpu.memory_space<vmem>>, vector<1x500x64xf32>
    %17 = vector.shape_cast %16 : vector<1x500x64xf32> to vector<500x64xf32>
    %c0_20 = arith.constant 0 : index
    %c0_21 = arith.constant 0 : index
    %18 = vector.load %arg11[%c0_20, %c0_21] : memref<512x64xf32, #tpu.memory_space<vmem>>, vector<500x64xf32>
    tpu.vector_store %arg11[%c0_20, %c0_21], %17 {strides = array<i32>} : memref<512x64xf32, #tpu.memory_space<vmem>>, vector<500x64xf32>,
    %c0_22 = arith.constant 0 : index
    %c0_23 = arith.constant 0 : index
    %19 = vector.load %arg1[%c0_22, %c0_23] : memref<3x512xf32, #tpu.memory_space<vmem>>, vector<3x512xf32>
    %c0_24 = arith.constant 0 : index
    %c0_25 = arith.constant 0 : index
    %20 = vector.load %arg11[%c0_24, %c0_25] : memref<512x64xf32, #tpu.memory_space<vmem>>, vector<512x64xf32>
    %cst_26 = arith.constant dense<0.000000e+00> : vector<3x64xf32>
    %21 = tpu.matmul %19, %20, %cst_26 {dimension_numbers = #tpu.dot_dimension_numbers<[1], [0], [0], [1], [0, 0, 1, 1], [], []>} : vector<3x512xf32>, vector<512x64xf32>, vector<3x64xf32> -> vector<3x64xf32>
    %22 = vector.extract_strided_slice %21 {offsets = [0, 0], sizes = [1, 64], strides = [1, 1]} : vector<3x64xf32> to vector<1x64xf32>
    %c1_27 = arith.constant 1 : index
    %c0_28 = arith.constant 0 : index
    %23 = vector.load %arg6[%c1_27, %c0_28] : memref<2x64xf32, #tpu.memory_space<vmem>>, vector<1x64xf32>
    tpu.vector_store %arg6[%c1_27, %c0_28], %22 {strides = array<i32>} : memref<2x64xf32, #tpu.memory_space<vmem>>, vector<1x64xf32>,
    %24 = vector.extract_strided_slice %21 {offsets = [1, 0], sizes = [1, 64], strides = [1, 1]} : vector<3x64xf32> to vector<1x64xf32>
    %c1_29 = arith.constant 1 : index
    %c0_30 = arith.constant 0 : index
    %25 = vector.load %arg7[%c1_29, %c0_30] : memref<2x64xf32, #tpu.memory_space<vmem>>, vector<1x64xf32>
    tpu.vector_store %arg7[%c1_29, %c0_30], %24 {strides = array<i32>} : memref<2x64xf32, #tpu.memory_space<vmem>>, vector<1x64xf32>,
    %26 = vector.extract_strided_slice %21 {offsets = [2, 0], sizes = [1, 64], strides = [1, 1]} : vector<3x64xf32> to vector<1x64xf32>
    %c1_31 = arith.constant 1 : index
    %c0_32 = arith.constant 0 : index
    %27 = vector.load %arg8[%c1_31, %c0_32] : memref<2x64xf32, #tpu.memory_space<vmem>>, vector<1x64xf32>
    tpu.vector_store %arg8[%c1_31, %c0_32], %26 {strides = array<i32>} : memref<2x64xf32, #tpu.memory_space<vmem>>, vector<1x64xf32>,
    %c0_33 = arith.constant 0 : index
    %c0_34 = arith.constant 0 : index
    %28 = vector.load %arg8[%c0_33, %c0_34] : memref<2x64xf32, #tpu.memory_space<vmem>>, vector<2x64xf32>
    %c0_35 = arith.constant 0 : index
    %c0_36 = arith.constant 0 : index
    %29 = vector.load %arg2[%c0_35, %c0_36] : memref<64x384xf32, #tpu.memory_space<vmem>>, vector<64x384xf32>
    %cst_37 = arith.constant dense<0.000000e+00> : vector<2x384xf32>
    %30 = tpu.matmul %28, %29, %cst_37 {dimension_numbers = #tpu.dot_dimension_numbers<[1], [0], [0], [1], [0, 0, 1, 1], [], []>} : vector<2x64xf32>, vector<64x384xf32>, vector<2x384xf32> -> vector<2x384xf32>
    %c0_38 = arith.constant 0 : index
    %c0_39 = arith.constant 0 : index
    %31 = vector.load %arg5[%c0_38, %c0_39] : memref<3x384xf32, #tpu.memory_space<vmem>>, vector<1x384xf32>
    %32 = vector.broadcast %31 : vector<1x384xf32> to vector<2x384xf32>
    %33 = arith.addf %30, %32 : vector<2x384xf32>
    %cst_40 = arith.constant 0.000000e+00 : f32
    %34 = vector.broadcast %cst_40 : f32 to vector<2x384xf32>
    %35 = arith.maximumf %33, %34 : vector<2x384xf32>
    %36 = vector.extract_strided_slice %35 {offsets = [0, 0], sizes = [2, 256], strides = [1, 1]} : vector<2x384xf32> to vector<2x256xf32>
    %c0_41 = arith.constant 0 : index
    %c0_42 = arith.constant 0 : index
    %37 = vector.load %arg3[%c0_41, %c0_42] : memref<256x8xf32, #tpu.memory_space<vmem>>, vector<256x8xf32>
    %cst_43 = arith.constant dense<0.000000e+00> : vector<2x8xf32>
    %38 = tpu.matmul %36, %37, %cst_43 {dimension_numbers = #tpu.dot_dimension_numbers<[1], [0], [0], [1], [0, 0, 1, 1], [], []>} : vector<2x256xf32>, vector<256x8xf32>, vector<2x8xf32> -> vector<2x8xf32>
    %c1_44 = arith.constant 1 : index
    %c0_45 = arith.constant 0 : index
    %39 = vector.load %arg5[%c1_44, %c0_45] : memref<3x384xf32, #tpu.memory_space<vmem>>, vector<1x8xf32>
    %40 = vector.broadcast %39 : vector<1x8xf32> to vector<2x8xf32>
    %41 = arith.addf %38, %40 : vector<2x8xf32>
    %c0_46 = arith.constant 0 : index
    %c0_47 = arith.constant 0 : index
    %42 = vector.load %arg9[%c0_46, %c0_47] : memref<2x8xf32, #tpu.memory_space<vmem>>, vector<2x8xf32>
    tpu.vector_store %arg9[%c0_46, %c0_47], %41 {strides = array<i32>} : memref<2x8xf32, #tpu.memory_space<vmem>>, vector<2x8xf32>,
    %43 = vector.extract_strided_slice %35 {offsets = [0, 256], sizes = [2, 128], strides = [1, 1]} : vector<2x384xf32> to vector<2x128xf32>
    %c0_48 = arith.constant 0 : index
    %c0_49 = arith.constant 0 : index
    %44 = vector.load %arg4[%c0_48, %c0_49] : memref<128x24xf32, #tpu.memory_space<vmem>>, vector<128x24xf32>
    %cst_50 = arith.constant dense<0.000000e+00> : vector<2x24xf32>
    %45 = tpu.matmul %43, %44, %cst_50 {dimension_numbers = #tpu.dot_dimension_numbers<[1], [0], [0], [1], [0, 0, 1, 1], [], []>} : vector<2x128xf32>, vector<128x24xf32>, vector<2x24xf32> -> vector<2x24xf32>
    %c2 = arith.constant 2 : index
    %c0_51 = arith.constant 0 : index
    %46 = vector.load %arg5[%c2, %c0_51] : memref<3x384xf32, #tpu.memory_space<vmem>>, vector<1x24xf32>
    %47 = vector.broadcast %46 : vector<1x24xf32> to vector<2x24xf32>
    %48 = arith.addf %45, %47 : vector<2x24xf32>
    %c0_52 = arith.constant 0 : index
    %c0_53 = arith.constant 0 : index
    %49 = vector.load %arg10[%c0_52, %c0_53] : memref<2x24xf32, #tpu.memory_space<vmem>>, vector<2x24xf32>
    tpu.vector_store %arg10[%c0_52, %c0_53], %48 {strides = array<i32>} : memref<2x24xf32, #tpu.memory_space<vmem>>, vector<2x24xf32>,
    return
  }
}

</mosaic_0001>

<llo_original>
// kernel: hcnn_dqn_forward.1
$region0: #{hcnn_dqn_forward.1}
  #allocation0 [shape = 'u32[]', space=smem, size = 0x4, offset = 0x4, fixed_abs, tag = 'smem constant byte address 0x4 - core index']
  #allocation1 [shape = 'u32[72,128]{1,0:T(1,128)}', space=vmem, size = 0x9000, scoped, tag = 'internal scratch']
  #allocation2 [shape = 'f32[512,64]{1,0:T(8,128)}', space=vmem, size = 0x40000, scoped, tag = 'scratch operand']
  %s0 = inlined_call_operand.vmem [shape: f32[2,500,64], index: 0, kind: input, shape index: {}]
  %s1 = inlined_call_operand.vmem [shape: f32[3,512], index: 1, kind: input, shape index: {}]
  %s2 = inlined_call_operand.vmem [shape: f32[64,384], index: 2, kind: input, shape index: {}]
  %s3 = inlined_call_operand.vmem [shape: f32[256,8], index: 3, kind: input, shape index: {}]
  %s4 = inlined_call_operand.vmem [shape: f32[128,24], index: 4, kind: input, shape index: {}]
  %s5 = inlined_call_operand.vmem [shape: f32[3,384], index: 5, kind: input, shape index: {}]
  %s6 = inlined_call_operand.vmem [shape: f32[2,64], index: 6, kind: output, shape index: {0}]
  %s7 = inlined_call_operand.vmem [shape: f32[2,64], index: 7, kind: output, shape index: {1}]
  %s8 = inlined_call_operand.vmem [shape: f32[2,64], index: 8, kind: output, shape index: {2}]
  %s9 = inlined_call_operand.hbm [shape: f32[2,8], index: 9, kind: output, shape index: {3}]
  %s10 = inlined_call_operand.hbm [shape: f32[2,24], index: 10, kind: output, shape index: {4}]
  %11 = xla_tuple %s6, %s7, %s8, %s9, %s10
  %s12 = sld [smem:[#allocation0]]
  $region66: #{hcnn_dqn_forward.1} parent=0
    _
  %s14 = ssub.s32 1, %s12
  %s15 = scalar_select 0, %s14, %s12
  $region1: #{hcnn_dqn_forward.1} parent=0
    #allocation3 [shape = 'u8[1024]{0}', space=vmem, size = 0x400, scoped, tag = 'output window, operand 3, single buffered']
    #allocation4 [shape = 's32[1]{0}', space=sflag, size = 0x4, scoped, tag = 'scoped memory for hcnn_dqn_forward.1']
    #allocation5 [shape = 'u8[1024]{0}', space=vmem, size = 0x400, scoped, tag = 'output window, operand 4, single buffered']
    #allocation6 [shape = 's32[1]{0}', space=sflag, size = 0x4, scoped, tag = 'scoped memory for hcnn_dqn_forward.1']
    %16 = vsyncpa [#allocation4], 0
    %17 = vsyncpa [#allocation6], 0
    // Predicated region
    $region2: #{hcnn_dqn_forward.1} parent=1 // pred_check
      _
    $region3: #{hcnn_dqn_forward.1} parent=1 // pred_check_branch
      %19 = sbr.rel (0) target = $region5
    $region4: #{hcnn_dqn_forward.1} parent=1 // pred_region
      _
    $region5: #{hcnn_dqn_forward.1} parent=1 // pred_fallthru
      _
    // Predicated region
    $region6: #{hcnn_dqn_forward.1} parent=1 // pred_check
      _
    $region7: #{hcnn_dqn_forward.1} parent=1 // pred_check_branch
      %21 = sbr.rel (0) target = $region9
    $region8: #{hcnn_dqn_forward.1} parent=1 // pred_region
      _
    $region9: #{hcnn_dqn_forward.1} parent=1 // pred_fallthru
      _
    // Predicated region
    $region10: #{hcnn_dqn_forward.1} parent=1 // pred_check
      _
    $region11: #{hcnn_dqn_forward.1} parent=1 // pred_check_branch
      %23 = sbr.rel (0) target = $region13
    $region12: #{hcnn_dqn_forward.1} parent=1 // pred_region
      _
    $region13: #{hcnn_dqn_forward.1} parent=1 // pred_fallthru
      _
    // Predicated region
    $region14: #{hcnn_dqn_forward.1} parent=1 // pred_check
      _
    $region15: #{hcnn_dqn_forward.1} parent=1 // pred_check_branch
      %25 = sbr.rel (0) target = $region17
    $region16: #{hcnn_dqn_forward.1} parent=1 // pred_region
      _
    $region17: #{hcnn_dqn_forward.1} parent=1 // pred_fallthru
      _
    // Predicated region
    $region18: #{hcnn_dqn_forward.1} parent=1 // pred_check
      _
    $region19: #{hcnn_dqn_forward.1} parent=1 // pred_check_branch
      %27 = sbr.rel (0) target = $region21
    $region20: #{hcnn_dqn_forward.1} parent=1 // pred_region
      _
    $region21: #{hcnn_dqn_forward.1} parent=1 // pred_fallthru
      _
    // Predicated region
    $region22: #{hcnn_dqn_forward.1} parent=1 // pred_check
      _
    $region23: #{hcnn_dqn_forward.1} parent=1 // pred_check_branch
      %29 = sbr.rel (0) target = $region25
    $region24: #{hcnn_dqn_forward.1} parent=1 // pred_region
      _
    $region25: #{hcnn_dqn_forward.1} parent=1 // pred_fallthru
      _
    %vm30 = vcmask 516096
    %31 = vst.msk [vmem:[#allocation2 + $0x1f4] sm:$0x1] %vm30, 1.0
    %vm32 = vcmask 523264
    %33 = vst.msk [vmem:[#allocation2 + $0x1f5] sm:$0xff] %vm32, 0.0
    %vm34 = vcmask 518144
    %35 = vst.msk [vmem:[#allocation2 + $0x1fd] sm:$0x7] %vm34, 0.0
    %v36 = vld [vmem:[%s0] sm:$0xff]
    %v37 = vld [vmem:[%s0 + $0x8] sm:$0xff]
    %v38 = vld [vmem:[%s0 + $0x10] sm:$0xff]
    %v39 = vld [vmem:[%s0 + $0x18] sm:$0xff]
    %v40 = vld [vmem:[%s0 + $0x20] sm:$0xff]
    %v41 = vld [vmem:[%s0 + $0x28] sm:$0xff]
    %v42 = vld [vmem:[%s0 + $0x30] sm:$0xff]
    %v43 = vld [vmem:[%s0 + $0x38] sm:$0xff]
    %v44 = vld [vmem:[%s0 + $0x40] sm:$0xff]
    %v45 = vld [vmem:[%s0 + $0x48] sm:$0xff]
    %v46 = vld [vmem:[%s0 + $0x50] sm:$0xff]
    %v47 = vld [vmem:[%s0 + $0x58] sm:$0xff]
    %v48 = vld [vmem:[%s0 + $0x60] sm:$0xff]
    %v49 = vld [vmem:[%s0 + $0x68] sm:$0xff]
    %v50 = vld [vmem:[%s0 + $0x70] sm:$0xff]
    %v51 = vld [vmem:[%s0 + $0x78] sm:$0xff]
    %v52 = vld [vmem:[%s0 + $0x80] sm:$0xff]
    %v53 = vld [vmem:[%s0 + $0x88] sm:$0xff]
    %v54 = vld [vmem:[%s0 + $0x90] sm:$0xff]
    %v55 = vld [vmem:[%s0 + $0x98] sm:$0xff]
    %v56 = vld [vmem:[%s0 + $0xa0] sm:$0xff]
    %v57 = vld [vmem:[%s0 + $0xa8] sm:$0xff]
    %v58 = vld [vmem:[%s0 + $0xb0] sm:$0xff]
    %v59 = vld [vmem:[%s0 + $0xb8] sm:$0xff]
    %v60 = vld [vmem:[%s0 + $0xc0] sm:$0xff]
    %v61 = vld [vmem:[%s0 + $0xc8] sm:$0xff]
    %v62 = vld [vmem:[%s0 + $0xd0] sm:$0xff]
    %v63 = vld [vmem:[%s0 + $0xd8] sm:$0xff]
    %v64 = vld [vmem:[%s0 + $0xe0] sm:$0xff]
    %v65 = vld [vmem:[%s0 + $0xe8] sm:$0xff]
    %v66 = vld [vmem:[%s0 + $0xf0] sm:$0xff]
    %v67 = vld [vmem:[%s0 + $0xf8] sm:$0xff]
    %v68 = vld [vmem:[%s0 + $0x100] sm:$0xff]
    %v69 = vld [vmem:[%s0 + $0x108] sm:$0xff]
    %v70 = vld [vmem:[%s0 + $0x110] sm:$0xff]
    %v71 = vld [vmem:[%s0 + $0x118] sm:$0xff]
    %v72 = vld [vmem:[%s0 + $0x120] sm:$0xff]
    %v73 = vld [vmem:[%s0 + $0x128] sm:$0xff]
    %v74 = vld [vmem:[%s0 + $0x130] sm:$0xff]
    %v75 = vld [vmem:[%s0 + $0x138] sm:$0xff]
    %v76 = vld [vmem:[%s0 + $0x140] sm:$0xff]
    %v77 = vld [vmem:[%s0 + $0x148] sm:$0xff]
    %v78 = vld [vmem:[%s0 + $0x150] sm:$0xff]
    %v79 = vld [vmem:[%s0 + $0x158] sm:$0xff]
    %v80 = vld [vmem:[%s0 + $0x160] sm:$0xff]
    %v81 = vld [vmem:[%s0 + $0x168] sm:$0xff]
    %v82 = vld [vmem:[%s0 + $0x170] sm:$0xff]
    %v83 = vld [vmem:[%s0 + $0x178] sm:$0xff]
    %v84 = vld [vmem:[%s0 + $0x180] sm:$0xff]
    %v85 = vld [vmem:[%s0 + $0x188] sm:$0xff]
    %v86 = vld [vmem:[%s0 + $0x190] sm:$0xff]
    %v87 = vld [vmem:[%s0 + $0x198] sm:$0xff]
    %v88 = vld [vmem:[%s0 + $0x1a0] sm:$0xff]
    %v89 = vld [vmem:[%s0 + $0x1a8] sm:$0xff]
    %v90 = vld [vmem:[%s0 + $0x1b0] sm:$0xff]
    %v91 = vld [vmem:[%s0 + $0x1b8] sm:$0xff]
    %v92 = vld [vmem:[%s0 + $0x1c0] sm:$0xff]
    %v93 = vld [vmem:[%s0 + $0x1c8] sm:$0xff]
    %v94 = vld [vmem:[%s0 + $0x1d0] sm:$0xff]
    %v95 = vld [vmem:[%s0 + $0x1d8] sm:$0xff]
    %v96 = vld [vmem:[%s0 + $0x1e0] sm:$0xff]
    %v97 = vld [vmem:[%s0 + $0x1e8] sm:$0xff]
    %v98 = vld [vmem:[%s0 + $0x1f0] sm:$0xf]
    %99 = vst.msk [vmem:[#allocation2] sm:$0xff] %vm32, %v36
    %100 = vst.msk [vmem:[#allocation2 + $0x8] sm:$0xff] %vm32, %v37
    %101 = vst.msk [vmem:[#allocation2 + $0x10] sm:$0xff] %vm32, %v38
    %102 = vst.msk [vmem:[#allocation2 + $0x18] sm:$0xff] %vm32, %v39
    %103 = vst.msk [vmem:[#allocation2 + $0x20] sm:$0xff] %vm32, %v40
    %104 = vst.msk [vmem:[#allocation2 + $0x28] sm:$0xff] %vm32, %v41
    %105 = vst.msk [vmem:[#allocation2 + $0x30] sm:$0xff] %vm32, %v42
    %106 = vst.msk [vmem:[#allocation2 + $0x38] sm:$0xff] %vm32, %v43
    %107 = vst.msk [vmem:[#allocation2 + $0x40] sm:$0xff] %vm32, %v44
    %108 = vst.msk [vmem:[#allocation2 + $0x48] sm:$0xff] %vm32, %v45
    %109 = vst.msk [vmem:[#allocation2 + $0x50] sm:$0xff] %vm32, %v46
    %110 = vst.msk [vmem:[#allocation2 + $0x58] sm:$0xff] %vm32, %v47
    %111 = vst.msk [vmem:[#allocation2 + $0x60] sm:$0xff] %vm32, %v48
    %112 = vst.msk [vmem:[#allocation2 + $0x68] sm:$0xff] %vm32, %v49
    %113 = vst.msk [vmem:[#allocation2 + $0x70] sm:$0xff] %vm32, %v50
    %114 = vst.msk [vmem:[#allocation2 + $0x78] sm:$0xff] %vm32, %v51
    %115 = vst.msk [vmem:[#allocation2 + $0x80] sm:$0xff] %vm32, %v52
    %116 = vst.msk [vmem:[#allocation2 + $0x88] sm:$0xff] %vm32, %v53
    %117 = vst.msk [vmem:[#allocation2 + $0x90] sm:$0xff] %vm32, %v54
    %118 = vst.msk [vmem:[#allocation2 + $0x98] sm:$0xff] %vm32, %v55
    %119 = vst.msk [vmem:[#allocation2 + $0xa0] sm:$0xff] %vm32, %v56
    %120 = vst.msk [vmem:[#allocation2 + $0xa8] sm:$0xff] %vm32, %v57
    %121 = vst.msk [vmem:[#allocation2 + $0xb0] sm:$0xff] %vm32, %v58
    %122 = vst.msk [vmem:[#allocation2 + $0xb8] sm:$0xff] %vm32, %v59
    %123 = vst.msk [vmem:[#allocation2 + $0xc0] sm:$0xff] %vm32, %v60
    %124 = vst.msk [vmem:[#allocation2 + $0xc8] sm:$0xff] %vm32, %v61
    %125 = vst.msk [vmem:[#allocation2 + $0xd0] sm:$0xff] %vm32, %v62
    %126 = vst.msk [vmem:[#allocation2 + $0xd8] sm:$0xff] %vm32, %v63
    %127 = vst.msk [vmem:[#allocation2 + $0xe0] sm:$0xff] %vm32, %v64
    %128 = vst.msk [vmem:[#allocation2 + $0xe8] sm:$0xff] %vm32, %v65
    %129 = vst.msk [vmem:[#allocation2 + $0xf0] sm:$0xff] %vm32, %v66
    %130 = vst.msk [vmem:[#allocation2 + $0xf8] sm:$0xff] %vm32, %v67
    %131 = vst.msk [vmem:[#allocation2 + $0x100] sm:$0xff] %vm32, %v68
    %132 = vst.msk [vmem:[#allocation2 + $0x108] sm:$0xff] %vm32, %v69
    %133 = vst.msk [vmem:[#allocation2 + $0x110] sm:$0xff] %vm32, %v70
    %134 = vst.msk [vmem:[#allocation2 + $0x118] sm:$0xff] %vm32, %v71
    %135 = vst.msk [vmem:[#allocation2 + $0x120] sm:$0xff] %vm32, %v72
    %136 = vst.msk [vmem:[#allocation2 + $0x128] sm:$0xff] %vm32, %v73
    %137 = vst.msk [vmem:[#allocation2 + $0x130] sm:$0xff] %vm32, %v74
    %138 = vst.msk [vmem:[#allocation2 + $0x138] sm:$0xff] %vm32, %v75
    %139 = vst.msk [vmem:[#allocation2 + $0x140] sm:$0xff] %vm32, %v76
    %140 = vst.msk [vmem:[#allocation2 + $0x148] sm:$0xff] %vm32, %v77
    %141 = vst.msk [vmem:[#allocation2 + $0x150] sm:$0xff] %vm32, %v78
    %142 = vst.msk [vmem:[#allocation2 + $0x158] sm:$0xff] %vm32, %v79
    %143 = vst.msk [vmem:[#allocation2 + $0x160] sm:$0xff] %vm32, %v80
    %144 = vst.msk [vmem:[#allocation2 + $0x168] sm:$0xff] %vm32, %v81
    %145 = vst.msk [vmem:[#allocation2 + $0x170] sm:$0xff] %vm32, %v82
    %146 = vst.msk [vmem:[#allocation2 + $0x178] sm:$0xff] %vm32, %v83
    %147 = vst.msk [vmem:[#allocation2 + $0x180] sm:$0xff] %vm32, %v84
    %148 = vst.msk [vmem:[#allocation2 + $0x188] sm:$0xff] %vm32, %v85
    %149 = vst.msk [vmem:[#allocation2 + $0x190] sm:$0xff] %vm32, %v86
    %150 = vst.msk [vmem:[#allocation2 + $0x198] sm:$0xff] %vm32, %v87
    %151 = vst.msk [vmem:[#allocation2 + $0x1a0] sm:$0xff] %vm32, %v88
    %152 = vst.msk [vmem:[#allocation2 + $0x1a8] sm:$0xff] %vm32, %v89
    %153 = vst.msk [vmem:[#allocation2 + $0x1b0] sm:$0xff] %vm32, %v90
    %154 = vst.msk [vmem:[#allocation2 + $0x1b8] sm:$0xff] %vm32, %v91
    %155 = vst.msk [vmem:[#allocation2 + $0x1c0] sm:$0xff] %vm32, %v92
    %156 = vst.msk [vmem:[#allocation2 + $0x1c8] sm:$0xff] %vm32, %v93
    %157 = vst.msk [vmem:[#allocation2 + $0x1d0] sm:$0xff] %vm32, %v94
    %158 = vst.msk [vmem:[#allocation2 + $0x1d8] sm:$0xff] %vm32, %v95
    %159 = vst.msk [vmem:[#allocation2 + $0x1e0] sm:$0xff] %vm32, %v96
    %160 = vst.msk [vmem:[#allocation2 + $0x1e8] sm:$0xff] %vm32, %v97
    %vm161 = vcmask 519168
    %162 = vst.msk [vmem:[#allocation2 + $0x1f0] sm:$0xf] %vm161, %v98
    %v163 = vld [vmem:[%s1] sm:$0x77]
    %v164 = vld [vmem:[%s1 + $0x8] sm:$0x77]
    %v165 = vld [vmem:[#allocation2] sm:$0xff]
    %v166 = vld [vmem:[#allocation2 + $0x8] sm:$0xff]
    %v167 = vld [vmem:[#allocation2 + $0x10] sm:$0xff]
    %v168 = vld [vmem:[#allocation2 + $0x18] sm:$0xff]
    %v169 = vld [vmem:[#allocation2 + $0x20] sm:$0xff]
    %v170 = vld [vmem:[#allocation2 + $0x28] sm:$0xff]
    %v171 = vld [vmem:[#allocation2 + $0x30] sm:$0xff]
    %v172 = vld [vmem:[#allocation2 + $0x38] sm:$0xff]
    %v173 = vld [vmem:[#allocation2 + $0x40] sm:$0xff]
    %v174 = vld [vmem:[#allocation2 + $0x48] sm:$0xff]
    %v175 = vld [vmem:[#allocation2 + $0x50] sm:$0xff]
    %v176 = vld [vmem:[#allocation2 + $0x58] sm:$0xff]
    %v177 = vld [vmem:[#allocation2 + $0x60] sm:$0xff]
    %v178 = vld [vmem:[#allocation2 + $0x68] sm:$0xff]
    %v179 = vld [vmem:[#allocation2 + $0x70] sm:$0xff]
    %v180 = vld [vmem:[#allocation2 + $0x78] sm:$0xff]
    %v181 = vld [vmem:[#allocation2 + $0x80] sm:$0xff]
    %v182 = vld [vmem:[#allocation2 + $0x88] sm:$0xff]
    %v183 = vld [vmem:[#allocation2 + $0x90] sm:$0xff]
    %v184 = vld [vmem:[#allocation2 + $0x98] sm:$0xff]
    %v185 = vld [vmem:[#allocation2 + $0xa0] sm:$0xff]
    %v186 = vld [vmem:[#allocation2 + $0xa8] sm:$0xff]
    %v187 = vld [vmem:[#allocation2 + $0xb0] sm:$0xff]
    %v188 = vld [vmem:[#allocation2 + $0xb8] sm:$0xff]
    %v189 = vld [vmem:[#allocation2 + $0xc0] sm:$0xff]
    %v190 = vld [vmem:[#allocation2 + $0xc8] sm:$0xff]
    %v191 = vld [vmem:[#allocation2 + $0xd0] sm:$0xff]
    %v192 = vld [vmem:[#allocation2 + $0xd8] sm:$0xff]
    %v193 = vld [vmem:[#allocation2 + $0xe0] sm:$0xff]
    %v194 = vld [vmem:[#allocation2 + $0xe8] sm:$0xff]
    %v195 = vld [vmem:[#allocation2 + $0xf0] sm:$0xff]
    %v196 = vld [vmem:[#allocation2 + $0xf8] sm:$0xff]
    %v197 = vld [vmem:[#allocation2 + $0x100] sm:$0xff]
    %v198 = vld [vmem:[#allocation2 + $0x108] sm:$0xff]
    %v199 = vld [vmem:[#allocation2 + $0x110] sm:$0xff]
    %v200 = vld [vmem:[#allocation2 + $0x118] sm:$0xff]
    %v201 = vld [vmem:[#allocation2 + $0x120] sm:$0xff]
    %v202 = vld [vmem:[#allocation2 + $0x128] sm:$0xff]
    %v203 = vld [vmem:[#allocation2 + $0x130] sm:$0xff]
    %v204 = vld [vmem:[#allocation2 + $0x138] sm:$0xff]
    %v205 = vld [vmem:[#allocation2 + $0x140] sm:$0xff]
    %v206 = vld [vmem:[#allocation2 + $0x148] sm:$0xff]
    %v207 = vld [vmem:[#allocation2 + $0x150] sm:$0xff]
    %v208 = vld [vmem:[#allocation2 + $0x158] sm:$0xff]
    %v209 = vld [vmem:[#allocation2 + $0x160] sm:$0xff]
    %v210 = vld [vmem:[#allocation2 + $0x168] sm:$0xff]
    %v211 = vld [vmem:[#allocation2 + $0x170] sm:$0xff]
    %v212 = vld [vmem:[#allocation2 + $0x178] sm:$0xff]
    %v213 = vld [vmem:[#allocation2 + $0x180] sm:$0xff]
    %v214 = vld [vmem:[#allocation2 + $0x188] sm:$0xff]
    %v215 = vld [vmem:[#allocation2 + $0x190] sm:$0xff]
    %v216 = vld [vmem:[#allocation2 + $0x198] sm:$0xff]
    %v217 = vld [vmem:[#allocation2 + $0x1a0] sm:$0xff]
    %v218 = vld [vmem:[#allocation2 + $0x1a8] sm:$0xff]
    %v219 = vld [vmem:[#allocation2 + $0x1b0] sm:$0xff]
    %v220 = vld [vmem:[#allocation2 + $0x1b8] sm:$0xff]
    %v221 = vld [vmem:[#allocation2 + $0x1c0] sm:$0xff]
    %v222 = vld [vmem:[#allocation2 + $0x1c8] sm:$0xff]
    %v223 = vld [vmem:[#allocation2 + $0x1d0] sm:$0xff]
    %v224 = vld [vmem:[#allocation2 + $0x1d8] sm:$0xff]
    %v225 = vld [vmem:[#allocation2 + $0x1e0] sm:$0xff]
    %v226 = vld [vmem:[#allocation2 + $0x1e8] sm:$0xff]
    %v227 = vld [vmem:[#allocation2 + $0x1f0] sm:$0xff]
    %v228 = vld [vmem:[#allocation2 + $0x1f8] sm:$0xff]
    %231 = vst [vmem:[#allocation1] ss:$2 sm:$0xff] %v163
    %s232 = scalar_lea.vmem [#allocation1], 16
    %233 = vst [vmem:[%s232] ss:$2 sm:$0xff] %v164
    %v234 = vld.sshfl [vmem:[#allocation1] sm:$0xff pattern:$0x75316420]
    %v235 = vld.sshfl [vmem:[#allocation1 + $0x8] sm:$0xff pattern:$0x75316420]
    %v236 = vld.sshfl [vmem:[#allocation1 + $0x10] sm:$0xff pattern:$0x75316420]
    %v237 = vld.sshfl [vmem:[#allocation1 + $0x18] sm:$0xff pattern:$0x75316420]
    %242 = vmatpush.msra.mxu0 %v180
    %243 = vmatpush.msra.mxu0 %v179
    %244 = vmatpush.msra.mxu0 %v178
    %245 = vmatpush.msra.mxu0 %v177
    %246 = vmatpush.msra.mxu0 %v176
    %247 = vmatpush.msra.mxu0 %v175
    %248 = vmatpush.msra.mxu0 %v174
    %249 = vmatpush.msra.mxu0 %v173
    %250 = vmatpush.msra.mxu0 %v172
    %251 = vmatpush.msra.mxu0 %v171
    %252 = vmatpush.msra.mxu0 %v170
    %253 = vmatpush.msra.mxu0 %v169
    %254 = vmatpush.msra.mxu0 %v168
    %255 = vmatpush.msra.mxu0 %v167
    %256 = vmatpush.msra.mxu0 %v166
    %257 = vmatpush.msra.mxu0 %v165
    %258 = vmatmul.f32.gmra.mxu0 %v234
    %v259 = vpop.f32.mrf.mxu0
    %v260 = vadd.f32 0.0, %v259
    %261 = vdwg.mxu0
    %262 = vmatpush.msra.mxu0 %v196
    %263 = vmatpush.msra.mxu0 %v195
    %264 = vmatpush.msra.mxu0 %v194
    %265 = vmatpush.msra.mxu0 %v193
    %266 = vmatpush.msra.mxu0 %v192
    %267 = vmatpush.msra.mxu0 %v191
    %268 = vmatpush.msra.mxu0 %v190
    %269 = vmatpush.msra.mxu0 %v189
    %270 = vmatpush.msra.mxu0 %v188
    %271 = vmatpush.msra.mxu0 %v187
    %272 = vmatpush.msra.mxu0 %v186
    %273 = vmatpush.msra.mxu0 %v185
    %274 = vmatpush.msra.mxu0 %v184
    %275 = vmatpush.msra.mxu0 %v183
    %276 = vmatpush.msra.mxu0 %v182
    %277 = vmatpush.msra.mxu0 %v181
    %278 = vmatmul.f32.gmra.mxu0 %v235
    %v279 = vpop.f32.mrf.mxu0
    %v280 = vadd.f32 %v260, %v279
    %281 = vdwg.mxu0
    %282 = vmatpush.msra.mxu0 %v212
    %283 = vmatpush.msra.mxu0 %v211
    %284 = vmatpush.msra.mxu0 %v210
    %285 = vmatpush.msra.mxu0 %v209
    %286 = vmatpush.msra.mxu0 %v208
    %287 = vmatpush.msra.mxu0 %v207
    %288 = vmatpush.msra.mxu0 %v206
    %289 = vmatpush.msra.mxu0 %v205
    %290 = vmatpush.msra.mxu0 %v204
    %291 = vmatpush.msra.mxu0 %v203
    %292 = vmatpush.msra.mxu0 %v202
    %293 = vmatpush.msra.mxu0 %v201
    %294 = vmatpush.msra.mxu0 %v200
    %295 = vmatpush.msra.mxu0 %v199
    %296 = vmatpush.msra.mxu0 %v198
    %297 = vmatpush.msra.mxu0 %v197
    %298 = vmatmul.f32.gmra.mxu0 %v236
    %v299 = vpop.f32.mrf.mxu0
    %v300 = vadd.f32 %v280, %v299
    %301 = vdwg.mxu0
    %302 = vmatpush.msra.mxu0 %v228
    %303 = vmatpush.msra.mxu0 %v227
    %304 = vmatpush.msra.mxu0 %v226
    %305 = vmatpush.msra.mxu0 %v225
    %306 = vmatpush.msra.mxu0 %v224
    %307 = vmatpush.msra.mxu0 %v223
    %308 = vmatpush.msra.mxu0 %v222
    %309 = vmatpush.msra.mxu0 %v221
    %310 = vmatpush.msra.mxu0 %v220
    %311 = vmatpush.msra.mxu0 %v219
    %312 = vmatpush.msra.mxu0 %v218
    %313 = vmatpush.msra.mxu0 %v217
    %314 = vmatpush.msra.mxu0 %v216
    %315 = vmatpush.msra.mxu0 %v215
    %316 = vmatpush.msra.mxu0 %v214
    %317 = vmatpush.msra.mxu0 %v213
    %318 = vmatmul.f32.gmra.mxu0 %v237
    %v319 = vpop.f32.mrf.mxu0
    %v320 = vadd.f32 %v300, %v319
    %321 = vdwg.mxu0
    %322 = vst.msk [vmem:[%s6] sm:$0x1] %vm30, %v320
    %vm323 = vcmask 517121
    %324 = vst.msk [vmem:[%s7 - $0x1] sm:$0x2] %vm323, %v320
    %vm325 = vcmask 518146
    %326 = vst.msk [vmem:[%s8 - $0x2] sm:$0x4] %vm325, %v320
    %s327 = scalar_lea.vmem %s0, 504
    %v328 = vld [vmem:[%s327] sm:$0xff]
    %v329 = vld [vmem:[%s327 + $0x8] sm:$0xff]
    %v330 = vld [vmem:[%s327 + $0x10] sm:$0xff]
    %v331 = vld [vmem:[%s327 + $0x18] sm:$0xff]
    %v332 = vld [vmem:[%s327 + $0x20] sm:$0xff]
    %v333 = vld [vmem:[%s327 + $0x28] sm:$0xff]
    %v334 = vld [vmem:[%s327 + $0x30] sm:$0xff]
    %v335 = vld [vmem:[%s327 + $0x38] sm:$0xff]
    %v336 = vld [vmem:[%s327 + $0x40] sm:$0xff]
    %v337 = vld [vmem:[%s327 + $0x48] sm:$0xff]
    %v338 = vld [vmem:[%s327 + $0x50] sm:$0xff]
    %v339 = vld [vmem:[%s327 + $0x58] sm:$0xff]
    %v340 = vld [vmem:[%s327 + $0x60] sm:$0xff]
    %v341 = vld [vmem:[%s327 + $0x68] sm:$0xff]
    %v342 = vld [vmem:[%s327 + $0x70] sm:$0xff]
    %v343 = vld [vmem:[%s327 + $0x78] sm:$0xff]
    %v344 = vld [vmem:[%s327 + $0x80] sm:$0xff]
    %v345 = vld [vmem:[%s327 + $0x88] sm:$0xff]
    %v346 = vld [vmem:[%s327 + $0x90] sm:$0xff]
    %v347 = vld [vmem:[%s327 + $0x98] sm:$0xff]
    %v348 = vld [vmem:[%s327 + $0xa0] sm:$0xff]
    %v349 = vld [vmem:[%s327 + $0xa8] sm:$0xff]
    %v350 = vld [vmem:[%s327 + $0xb0] sm:$0xff]
    %v351 = vld [vmem:[%s327 + $0xb8] sm:$0xff]
    %v352 = vld [vmem:[%s327 + $0xc0] sm:$0xff]
    %v353 = vld [vmem:[%s327 + $0xc8] sm:$0xff]
    %v354 = vld [vmem:[%s327 + $0xd0] sm:$0xff]
    %v355 = vld [vmem:[%s327 + $0xd8] sm:$0xff]
    %v356 = vld [vmem:[%s327 + $0xe0] sm:$0xff]
    %v357 = vld [vmem:[%s327 + $0xe8] sm:$0xff]
    %v358 = vld [vmem:[%s327 + $0xf0] sm:$0xff]
    %v359 = vld [vmem:[%s327 + $0xf8] sm:$0xff]
    %v360 = vld [vmem:[%s327 + $0x100] sm:$0xff]
    %v361 = vld [vmem:[%s327 + $0x108] sm:$0xff]
    %v362 = vld [vmem:[%s327 + $0x110] sm:$0xff]
    %v363 = vld [vmem:[%s327 + $0x118] sm:$0xff]
    %v364 = vld [vmem:[%s327 + $0x120] sm:$0xff]
    %v365 = vld [vmem:[%s327 + $0x128] sm:$0xff]
    %v366 = vld [vmem:[%s327 + $0x130] sm:$0xff]
    %v367 = vld [vmem:[%s327 + $0x138] sm:$0xff]
    %v368 = vld [vmem:[%s327 + $0x140] sm:$0xff]
    %v369 = vld [vmem:[%s327 + $0x148] sm:$0xff]
    %v370 = vld [vmem:[%s327 + $0x150] sm:$0xff]
    %v371 = vld [vmem:[%s327 + $0x158] sm:$0xff]
    %v372 = vld [vmem:[%s327 + $0x160] sm:$0xff]
    %v373 = vld [vmem:[%s327 + $0x168] sm:$0xff]
    %v374 = vld [vmem:[%s327 + $0x170] sm:$0xff]
    %v375 = vld [vmem:[%s327 + $0x178] sm:$0xff]
    %v376 = vld [vmem:[%s327 + $0x180] sm:$0xff]
    %v377 = vld [vmem:[%s327 + $0x188] sm:$0xff]
    %v378 = vld [vmem:[%s327 + $0x190] sm:$0xff]
    %v379 = vld [vmem:[%s327 + $0x198] sm:$0xff]
    %v380 = vld [vmem:[%s327 + $0x1a0] sm:$0xff]
    %v381 = vld [vmem:[%s327 + $0x1a8] sm:$0xff]
    %v382 = vld [vmem:[%s327 + $0x1b0] sm:$0xff]
    %v383 = vld [vmem:[%s327 + $0x1b8] sm:$0xff]
    %v384 = vld [vmem:[%s327 + $0x1c0] sm:$0xff]
    %v385 = vld [vmem:[%s327 + $0x1c8] sm:$0xff]
    %v386 = vld [vmem:[%s327 + $0x1d0] sm:$0xff]
    %v387 = vld [vmem:[%s327 + $0x1d8] sm:$0xff]
    %v388 = vld [vmem:[%s327 + $0x1e0] sm:$0xff]
    %v389 = vld [vmem:[%s327 + $0x1e8] sm:$0xff]
    %v390 = vld [vmem:[%s327 + $0x1f0] sm:$0xf]
    %391 = vst.msk [vmem:[#allocation2] sm:$0xff] %vm32, %v328
    %392 = vst.msk [vmem:[#allocation2 + $0x8] sm:$0xff] %vm32, %v329
    %393 = vst.msk [vmem:[#allocation2 + $0x10] sm:$0xff] %vm32, %v330
    %394 = vst.msk [vmem:[#allocation2 + $0x18] sm:$0xff] %vm32, %v331
    %395 = vst.msk [vmem:[#allocation2 + $0x20] sm:$0xff] %vm32, %v332
    %396 = vst.msk [vmem:[#allocation2 + $0x28] sm:$0xff] %vm32, %v333
    %397 = vst.msk [vmem:[#allocation2 + $0x30] sm:$0xff] %vm32, %v334
    %398 = vst.msk [vmem:[#allocation2 + $0x38] sm:$0xff] %vm32, %v335
    %399 = vst.msk [vmem:[#allocation2 + $0x40] sm:$0xff] %vm32, %v336
    %400 = vst.msk [vmem:[#allocation2 + $0x48] sm:$0xff] %vm32, %v337
    %401 = vst.msk [vmem:[#allocation2 + $0x50] sm:$0xff] %vm32, %v338
    %402 = vst.msk [vmem:[#allocation2 + $0x58] sm:$0xff] %vm32, %v339
    %403 = vst.msk [vmem:[#allocation2 + $0x60] sm:$0xff] %vm32, %v340
    %404 = vst.msk [vmem:[#allocation2 + $0x68] sm:$0xff] %vm32, %v341
    %405 = vst.msk [vmem:[#allocation2 + $0x70] sm:$0xff] %vm32, %v342
    %406 = vst.msk [vmem:[#allocation2 + $0x78] sm:$0xff] %vm32, %v343
    %407 = vst.msk [vmem:[#allocation2 + $0x80] sm:$0xff] %vm32, %v344
    %408 = vst.msk [vmem:[#allocation2 + $0x88] sm:$0xff] %vm32, %v345
    %409 = vst.msk [vmem:[#allocation2 + $0x90] sm:$0xff] %vm32, %v346
    %410 = vst.msk [vmem:[#allocation2 + $0x98] sm:$0xff] %vm32, %v347
    %411 = vst.msk [vmem:[#allocation2 + $0xa0] sm:$0xff] %vm32, %v348
    %412 = vst.msk [vmem:[#allocation2 + $0xa8] sm:$0xff] %vm32, %v349
    %413 = vst.msk [vmem:[#allocation2 + $0xb0] sm:$0xff] %vm32, %v350
    %414 = vst.msk [vmem:[#allocation2 + $0xb8] sm:$0xff] %vm32, %v351
    %415 = vst.msk [vmem:[#allocation2 + $0xc0] sm:$0xff] %vm32, %v352
    %416 = vst.msk [vmem:[#allocation2 + $0xc8] sm:$0xff] %vm32, %v353
    %417 = vst.msk [vmem:[#allocation2 + $0xd0] sm:$0xff] %vm32, %v354
    %418 = vst.msk [vmem:[#allocation2 + $0xd8] sm:$0xff] %vm32, %v355
    %419 = vst.msk [vmem:[#allocation2 + $0xe0] sm:$0xff] %vm32, %v356
    %420 = vst.msk [vmem:[#allocation2 + $0xe8] sm:$0xff] %vm32, %v357
    %421 = vst.msk [vmem:[#allocation2 + $0xf0] sm:$0xff] %vm32, %v358
    %422 = vst.msk [vmem:[#allocation2 + $0xf8] sm:$0xff] %vm32, %v359
    %423 = vst.msk [vmem:[#allocation2 + $0x100] sm:$0xff] %vm32, %v360
    %424 = vst.msk [vmem:[#allocation2 + $0x108] sm:$0xff] %vm32, %v361
    %425 = vst.msk [vmem:[#allocation2 + $0x110] sm:$0xff] %vm32, %v362
    %426 = vst.msk [vmem:[#allocation2 + $0x118] sm:$0xff] %vm32, %v363
    %427 = vst.msk [vmem:[#allocation2 + $0x120] sm:$0xff] %vm32, %v364
    %428 = vst.msk [vmem:[#allocation2 + $0x128] sm:$0xff] %vm32, %v365
    %429 = vst.msk [vmem:[#allocation2 + $0x130] sm:$0xff] %vm32, %v366
    %430 = vst.msk [vmem:[#allocation2 + $0x138] sm:$0xff] %vm32, %v367
    %431 = vst.msk [vmem:[#allocation2 + $0x140] sm:$0xff] %vm32, %v368
    %432 = vst.msk [vmem:[#allocation2 + $0x148] sm:$0xff] %vm32, %v369
    %433 = vst.msk [vmem:[#allocation2 + $0x150] sm:$0xff] %vm32, %v370
    %434 = vst.msk [vmem:[#allocation2 + $0x158] sm:$0xff] %vm32, %v371
    %435 = vst.msk [vmem:[#allocation2 + $0x160] sm:$0xff] %vm32, %v372
    %436 = vst.msk [vmem:[#allocation2 + $0x168] sm:$0xff] %vm32, %v373
    %437 = vst.msk [vmem:[#allocation2 + $0x170] sm:$0xff] %vm32, %v374
    %438 = vst.msk [vmem:[#allocation2 + $0x178] sm:$0xff] %vm32, %v375
    %439 = vst.msk [vmem:[#allocation2 + $0x180] sm:$0xff] %vm32, %v376
    %440 = vst.msk [vmem:[#allocation2 + $0x188] sm:$0xff] %vm32, %v377
    %441 = vst.msk [vmem:[#allocation2 + $0x190] sm:$0xff] %vm32, %v378
    %442 = vst.msk [vmem:[#allocation2 + $0x198] sm:$0xff] %vm32, %v379
    %443 = vst.msk [vmem:[#allocation2 + $0x1a0] sm:$0xff] %vm32, %v380
    %444 = vst.msk [vmem:[#allocation2 + $0x1a8] sm:$0xff] %vm32, %v381
    %445 = vst.msk [vmem:[#allocation2 + $0x1b0] sm:$0xff] %vm32, %v382
    %446 = vst.msk [vmem:[#allocation2 + $0x1b8] sm:$0xff] %vm32, %v383
    %447 = vst.msk [vmem:[#allocation2 + $0x1c0] sm:$0xff] %vm32, %v384
    %448 = vst.msk [vmem:[#allocation2 + $0x1c8] sm:$0xff] %vm32, %v385
    %449 = vst.msk [vmem:[#allocation2 + $0x1d0] sm:$0xff] %vm32, %v386
    %450 = vst.msk [vmem:[#allocation2 + $0x1d8] sm:$0xff] %vm32, %v387
    %451 = vst.msk [vmem:[#allocation2 + $0x1e0] sm:$0xff] %vm32, %v388
    %452 = vst.msk [vmem:[#allocation2 + $0x1e8] sm:$0xff] %vm32, %v389
    %453 = vst.msk [vmem:[#allocation2 + $0x1f0] sm:$0xf] %vm161, %v390
    %v454 = vld [vmem:[%s1] sm:$0x77]
    %v455 = vld [vmem:[%s1 + $0x8] sm:$0x77]
    %v456 = vld [vmem:[#allocation2] sm:$0xff]
    %v457 = vld [vmem:[#allocation2 + $0x8] sm:$0xff]
    %v458 = vld [vmem:[#allocation2 + $0x10] sm:$0xff]
    %v459 = vld [vmem:[#allocation2 + $0x18] sm:$0xff]
    %v460 = vld [vmem:[#allocation2 + $0x20] sm:$0xff]
    %v461 = vld [vmem:[#allocation2 + $0x28] sm:$0xff]
    %v462 = vld [vmem:[#allocation2 + $0x30] sm:$0xff]
    %v463 = vld [vmem:[#allocation2 + $0x38] sm:$0xff]
    %v464 = vld [vmem:[#allocation2 + $0x40] sm:$0xff]
    %v465 = vld [vmem:[#allocation2 + $0x48] sm:$0xff]
    %v466 = vld [vmem:[#allocation2 + $0x50] sm:$0xff]
    %v467 = vld [vmem:[#allocation2 + $0x58] sm:$0xff]
    %v468 = vld [vmem:[#allocation2 + $0x60] sm:$0xff]
    %v469 = vld [vmem:[#allocation2 + $0x68] sm:$0xff]
    %v470 = vld [vmem:[#allocation2 + $0x70] sm:$0xff]
    %v471 = vld [vmem:[#allocation2 + $0x78] sm:$0xff]
    %v472 = vld [vmem:[#allocation2 + $0x80] sm:$0xff]
    %v473 = vld [vmem:[#allocation2 + $0x88] sm:$0xff]
    %v474 = vld [vmem:[#allocation2 + $0x90] sm:$0xff]
    %v475 = vld [vmem:[#allocation2 + $0x98] sm:$0xff]
    %v476 = vld [vmem:[#allocation2 + $0xa0] sm:$0xff]
    %v477 = vld [vmem:[#allocation2 + $0xa8] sm:$0xff]
    %v478 = vld [vmem:[#allocation2 + $0xb0] sm:$0xff]
    %v479 = vld [vmem:[#allocation2 + $0xb8] sm:$0xff]
    %v480 = vld [vmem:[#allocation2 + $0xc0] sm:$0xff]
    %v481 = vld [vmem:[#allocation2 + $0xc8] sm:$0xff]
    %v482 = vld [vmem:[#allocation2 + $0xd0] sm:$0xff]
    %v483 = vld [vmem:[#allocation2 + $0xd8] sm:$0xff]
    %v484 = vld [vmem:[#allocation2 + $0xe0] sm:$0xff]
    %v485 = vld [vmem:[#allocation2 + $0xe8] sm:$0xff]
    %v486 = vld [vmem:[#allocation2 + $0xf0] sm:$0xff]
    %v487 = vld [vmem:[#allocation2 + $0xf8] sm:$0xff]
    %v488 = vld [vmem:[#allocation2 + $0x100] sm:$0xff]
    %v489 = vld [vmem:[#allocation2 + $0x108] sm:$0xff]
    %v490 = vld [vmem:[#allocation2 + $0x110] sm:$0xff]
    %v491 = vld [vmem:[#allocation2 + $0x118] sm:$0xff]
    %v492 = vld [vmem:[#allocation2 + $0x120] sm:$0xff]
    %v493 = vld [vmem:[#allocation2 + $0x128] sm:$0xff]
    %v494 = vld [vmem:[#allocation2 + $0x130] sm:$0xff]
    %v495 = vld [vmem:[#allocation2 + $0x138] sm:$0xff]
    %v496 = vld [vmem:[#allocation2 + $0x140] sm:$0xff]
    %v497 = vld [vmem:[#allocation2 + $0x148] sm:$0xff]
    %v498 = vld [vmem:[#allocation2 + $0x150] sm:$0xff]
    %v499 = vld [vmem:[#allocation2 + $0x158] sm:$0xff]
    %v500 = vld [vmem:[#allocation2 + $0x160] sm:$0xff]
    %v501 = vld [vmem:[#allocation2 + $0x168] sm:$0xff]
    %v502 = vld [vmem:[#allocation2 + $0x170] sm:$0xff]
    %v503 = vld [vmem:[#allocation2 + $0x178] sm:$0xff]
    %v504 = vld [vmem:[#allocation2 + $0x180] sm:$0xff]
    %v505 = vld [vmem:[#allocation2 + $0x188] sm:$0xff]
    %v506 = vld [vmem:[#allocation2 + $0x190] sm:$0xff]
    %v507 = vld [vmem:[#allocation2 + $0x198] sm:$0xff]
    %v508 = vld [vmem:[#allocation2 + $0x1a0] sm:$0xff]
    %v509 = vld [vmem:[#allocation2 + $0x1a8] sm:$0xff]
    %v510 = vld [vmem:[#allocation2 + $0x1b0] sm:$0xff]
    %v511 = vld [vmem:[#allocation2 + $0x1b8] sm:$0xff]
    %v512 = vld [vmem:[#allocation2 + $0x1c0] sm:$0xff]
    %v513 = vld [vmem:[#allocation2 + $0x1c8] sm:$0xff]
    %v514 = vld [vmem:[#allocation2 + $0x1d0] sm:$0xff]
    %v515 = vld [vmem:[#allocation2 + $0x1d8] sm:$0xff]
    %v516 = vld [vmem:[#allocation2 + $0x1e0] sm:$0xff]
    %v517 = vld [vmem:[#allocation2 + $0x1e8] sm:$0xff]
    %v518 = vld [vmem:[#allocation2 + $0x1f0] sm:$0xff]
    %v519 = vld [vmem:[#allocation2 + $0x1f8] sm:$0xff]
    %522 = vst [vmem:[#allocation1] ss:$2 sm:$0xff] %v454
    %s523 = scalar_lea.vmem [#allocation1], 16
    %524 = vst [vmem:[%s523] ss:$2 sm:$0xff] %v455
    %v525 = vld.sshfl [vmem:[#allocation1] sm:$0xff pattern:$0x75316420]
    %v526 = vld.sshfl [vmem:[#allocation1 + $0x8] sm:$0xff pattern:$0x75316420]
    %v527 = vld.sshfl [vmem:[#allocation1 + $0x10] sm:$0xff pattern:$0x75316420]
    %v528 = vld.sshfl [vmem:[#allocation1 + $0x18] sm:$0xff pattern:$0x75316420]
    %533 = vmatpush.msra.mxu0 %v471
    %534 = vmatpush.msra.mxu0 %v470
    %535 = vmatpush.msra.mxu0 %v469
    %536 = vmatpush.msra.mxu0 %v468
    %537 = vmatpush.msra.mxu0 %v467
    %538 = vmatpush.msra.mxu0 %v466
    %539 = vmatpush.msra.mxu0 %v465
    %540 = vmatpush.msra.mxu0 %v464
    %541 = vmatpush.msra.mxu0 %v463
    %542 = vmatpush.msra.mxu0 %v462
    %543 = vmatpush.msra.mxu0 %v461
    %544 = vmatpush.msra.mxu0 %v460
    %545 = vmatpush.msra.mxu0 %v459
    %546 = vmatpush.msra.mxu0 %v458
    %547 = vmatpush.msra.mxu0 %v457
    %548 = vmatpush.msra.mxu0 %v456
    %549 = vmatmul.f32.gmra.mxu0 %v525
    %v550 = vpop.f32.mrf.mxu0
    %v551 = vadd.f32 0.0, %v550
    %552 = vdwg.mxu0
    %553 = vmatpush.msra.mxu0 %v487
    %554 = vmatpush.msra.mxu0 %v486
    %555 = vmatpush.msra.mxu0 %v485
    %556 = vmatpush.msra.mxu0 %v484
    %557 = vmatpush.msra.mxu0 %v483
    %558 = vmatpush.msra.mxu0 %v482
    %559 = vmatpush.msra.mxu0 %v481
    %560 = vmatpush.msra.mxu0 %v480
    %561 = vmatpush.msra.mxu0 %v479
    %562 = vmatpush.msra.mxu0 %v478
    %563 = vmatpush.msra.mxu0 %v477
    %564 = vmatpush.msra.mxu0 %v476
    %565 = vmatpush.msra.mxu0 %v475
    %566 = vmatpush.msra.mxu0 %v474
    %567 = vmatpush.msra.mxu0 %v473
    %568 = vmatpush.msra.mxu0 %v472
    %569 = vmatmul.f32.gmra.mxu0 %v526
    %v570 = vpop.f32.mrf.mxu0
    %v571 = vadd.f32 %v551, %v570
    %572 = vdwg.mxu0
    %573 = vmatpush.msra.mxu0 %v503
    %574 = vmatpush.msra.mxu0 %v502
    %575 = vmatpush.msra.mxu0 %v501
    %576 = vmatpush.msra.mxu0 %v500
    %577 = vmatpush.msra.mxu0 %v499
    %578 = vmatpush.msra.mxu0 %v498
    %579 = vmatpush.msra.mxu0 %v497
    %580 = vmatpush.msra.mxu0 %v496
    %581 = vmatpush.msra.mxu0 %v495
    %582 = vmatpush.msra.mxu0 %v494
    %583 = vmatpush.msra.mxu0 %v493
    %584 = vmatpush.msra.mxu0 %v492
    %585 = vmatpush.msra.mxu0 %v491
    %586 = vmatpush.msra.mxu0 %v490
    %587 = vmatpush.msra.mxu0 %v489
    %588 = vmatpush.msra.mxu0 %v488
    %589 = vmatmul.f32.gmra.mxu0 %v527
    %v590 = vpop.f32.mrf.mxu0
    %v591 = vadd.f32 %v571, %v590
    %592 = vdwg.mxu0
    %593 = vmatpush.msra.mxu0 %v519
    %594 = vmatpush.msra.mxu0 %v518
    %595 = vmatpush.msra.mxu0 %v517
    %596 = vmatpush.msra.mxu0 %v516
    %597 = vmatpush.msra.mxu0 %v515
    %598 = vmatpush.msra.mxu0 %v514
    %599 = vmatpush.msra.mxu0 %v513
    %600 = vmatpush.msra.mxu0 %v512
    %601 = vmatpush.msra.mxu0 %v511
    %602 = vmatpush.msra.mxu0 %v510
    %603 = vmatpush.msra.mxu0 %v509
    %604 = vmatpush.msra.mxu0 %v508
    %605 = vmatpush.msra.mxu0 %v507
    %606 = vmatpush.msra.mxu0 %v506
    %607 = vmatpush.msra.mxu0 %v505
    %608 = vmatpush.msra.mxu0 %v504
    %609 = vmatmul.f32.gmra.mxu0 %v528
    %v610 = vpop.f32.mrf.mxu0
    %v611 = vadd.f32 %v591, %v610
    %612 = vdwg.mxu0
    %613 = vst.msk [vmem:[%s6 + $0x1] sm:$0x1] %vm30, %v611
    %614 = vst.msk [vmem:[%s7] sm:$0x2] %vm323, %v611
    %615 = vst.msk [vmem:[%s8 - $0x1] sm:$0x4] %vm325, %v611
    %v616 = vld [vmem:[%s8] sm:$0x3]
    %v617 = vld [vmem:[%s2] sm:$0xff]
    %v618 = vld [vmem:[%s2 + $0x8] sm:$0xff]
    %v619 = vld [vmem:[%s2 + $0x10] sm:$0xff]
    %v620 = vld [vmem:[%s2 + $0x18] sm:$0xff]
    %v621 = vld [vmem:[%s2 + $0x20] sm:$0xff]
    %v622 = vld [vmem:[%s2 + $0x28] sm:$0xff]
    %v623 = vld [vmem:[%s2 + $0x30] sm:$0xff]
    %v624 = vld [vmem:[%s2 + $0x38] sm:$0xff]
    %v625 = vld [vmem:[%s2 + $0x40] sm:$0xff]
    %v626 = vld [vmem:[%s2 + $0x48] sm:$0xff]
    %v627 = vld [vmem:[%s2 + $0x50] sm:$0xff]
    %v628 = vld [vmem:[%s2 + $0x58] sm:$0xff]
    %v629 = vld [vmem:[%s2 + $0x60] sm:$0xff]
    %v630 = vld [vmem:[%s2 + $0x68] sm:$0xff]
    %v631 = vld [vmem:[%s2 + $0x70] sm:$0xff]
    %v632 = vld [vmem:[%s2 + $0x78] sm:$0xff]
    %v633 = vld [vmem:[%s2 + $0x80] sm:$0xff]
    %v634 = vld [vmem:[%s2 + $0x88] sm:$0xff]
    %v635 = vld [vmem:[%s2 + $0x90] sm:$0xff]
    %v636 = vld [vmem:[%s2 + $0x98] sm:$0xff]
    %v637 = vld [vmem:[%s2 + $0xa0] sm:$0xff]
    %v638 = vld [vmem:[%s2 + $0xa8] sm:$0xff]
    %v639 = vld [vmem:[%s2 + $0xb0] sm:$0xff]
    %v640 = vld [vmem:[%s2 + $0xb8] sm:$0xff]
    %v641 = vld [vmem:[%s5] ss:$4 sm:$0x7]
    %v643 = vperm.slane %v641, 0
    %v644 = vperm.slane %v641, 1
    %v645 = vperm.slane %v641, 2
    %v650 = vsel %vm32, %v616, 0
    %652 = vmatpush.msra.mxu0 0.0
    %653 = vmatpush.msra.mxu0 0.0
    %654 = vmatpush.msra.mxu0 0.0
    %655 = vmatpush.msra.mxu0 0.0
    %656 = vmatpush.msra.mxu0 0.0
    %657 = vmatpush.msra.mxu0 0.0
    %658 = vmatpush.msra.mxu0 0.0
    %659 = vmatpush.msra.mxu0 0.0
    %660 = vmatpush.msra.mxu0 %v638
    %661 = vmatpush.msra.mxu0 %v635
    %662 = vmatpush.msra.mxu0 %v632
    %663 = vmatpush.msra.mxu0 %v629
    %664 = vmatpush.msra.mxu0 %v626
    %665 = vmatpush.msra.mxu0 %v623
    %666 = vmatpush.msra.mxu0 %v620
    %667 = vmatpush.msra.mxu0 %v617
    %668 = vmatmul.f32.gmra.mxu0 %v650
    %v669 = vpop.f32.mrf.mxu0
    %v670 = vadd.f32 %v643, %v669
    %671 = vdwg.mxu0
    %672 = vmatpush.msra.mxu0 0.0
    %673 = vmatpush.msra.mxu0 0.0
    %674 = vmatpush.msra.mxu0 0.0
    %675 = vmatpush.msra.mxu0 0.0
    %676 = vmatpush.msra.mxu0 0.0
    %677 = vmatpush.msra.mxu0 0.0
    %678 = vmatpush.msra.mxu0 0.0
    %679 = vmatpush.msra.mxu0 0.0
    %680 = vmatpush.msra.mxu0 %v639
    %681 = vmatpush.msra.mxu0 %v636
    %682 = vmatpush.msra.mxu0 %v633
    %683 = vmatpush.msra.mxu0 %v630
    %684 = vmatpush.msra.mxu0 %v627
    %685 = vmatpush.msra.mxu0 %v624
    %686 = vmatpush.msra.mxu0 %v621
    %687 = vmatpush.msra.mxu0 %v618
    %688 = vmatmul.f32.gmra.mxu0 %v650
    %v689 = vpop.f32.mrf.mxu0
    %v690 = vadd.f32 %v644, %v689
    %691 = vdwg.mxu0
    %692 = vmatpush.msra.mxu0 0.0
    %693 = vmatpush.msra.mxu0 0.0
    %694 = vmatpush.msra.mxu0 0.0
    %695 = vmatpush.msra.mxu0 0.0
    %696 = vmatpush.msra.mxu0 0.0
    %697 = vmatpush.msra.mxu0 0.0
    %698 = vmatpush.msra.mxu0 0.0
    %699 = vmatpush.msra.mxu0 0.0
    %700 = vmatpush.msra.mxu0 %v640
    %701 = vmatpush.msra.mxu0 %v637
    %702 = vmatpush.msra.mxu0 %v634
    %703 = vmatpush.msra.mxu0 %v631
    %704 = vmatpush.msra.mxu0 %v628
    %705 = vmatpush.msra.mxu0 %v625
    %706 = vmatpush.msra.mxu0 %v622
    %707 = vmatpush.msra.mxu0 %v619
    %708 = vmatmul.f32.gmra.mxu0 %v650
    %v709 = vpop.f32.mrf.mxu0
    %v710 = vadd.f32 %v645, %v709
    %711 = vdwg.mxu0
    %v712 = vmax.f32 %v670, 0.0
    %v713 = vmax.f32 %v690, 0.0
    %v714 = vmax.f32 %v710, 0.0
    %v715 = vld [vmem:[%s3] sm:$0xff]
    %v716 = vld [vmem:[%s3 + $0x8] sm:$0xff]
    %v717 = vld [vmem:[%s3 + $0x10] sm:$0xff]
    %v718 = vld [vmem:[%s3 + $0x18] sm:$0xff]
    %v719 = vld [vmem:[%s3 + $0x20] sm:$0xff]
    %v720 = vld [vmem:[%s3 + $0x28] sm:$0xff]
    %v721 = vld [vmem:[%s3 + $0x30] sm:$0xff]
    %v722 = vld [vmem:[%s3 + $0x38] sm:$0xff]
    %v723 = vld [vmem:[%s3 + $0x40] sm:$0xff]
    %v724 = vld [vmem:[%s3 + $0x48] sm:$0xff]
    %v725 = vld [vmem:[%s3 + $0x50] sm:$0xff]
    %v726 = vld [vmem:[%s3 + $0x58] sm:$0xff]
    %v727 = vld [vmem:[%s3 + $0x60] sm:$0xff]
    %v728 = vld [vmem:[%s3 + $0x68] sm:$0xff]
    %v729 = vld [vmem:[%s3 + $0x70] sm:$0xff]
    %v730 = vld [vmem:[%s3 + $0x78] sm:$0xff]
    %v731 = vld [vmem:[%s3 + $0x80] sm:$0xff]
    %v732 = vld [vmem:[%s3 + $0x88] sm:$0xff]
    %v733 = vld [vmem:[%s3 + $0x90] sm:$0xff]
    %v734 = vld [vmem:[%s3 + $0x98] sm:$0xff]
    %v735 = vld [vmem:[%s3 + $0xa0] sm:$0xff]
    %v736 = vld [vmem:[%s3 + $0xa8] sm:$0xff]
    %v737 = vld [vmem:[%s3 + $0xb0] sm:$0xff]
    %v738 = vld [vmem:[%s3 + $0xb8] sm:$0xff]
    %v739 = vld [vmem:[%s3 + $0xc0] sm:$0xff]
    %v740 = vld [vmem:[%s3 + $0xc8] sm:$0xff]
    %v741 = vld [vmem:[%s3 + $0xd0] sm:$0xff]
    %v742 = vld [vmem:[%s3 + $0xd8] sm:$0xff]
    %v743 = vld [vmem:[%s3 + $0xe0] sm:$0xff]
    %v744 = vld [vmem:[%s3 + $0xe8] sm:$0xff]
    %v745 = vld [vmem:[%s3 + $0xf0] sm:$0xff]
    %v746 = vld [vmem:[%s3 + $0xf8] sm:$0xff]
    %v747 = vld [vmem:[%s5 + $0x1] sm:$0x1]
    %v748 = vperm.slane %v747, 0
    %749 = vmatpush.msra.mxu0 %v730
    %750 = vmatpush.msra.mxu0 %v729
    %751 = vmatpush.msra.mxu0 %v728
    %752 = vmatpush.msra.mxu0 %v727
    %753 = vmatpush.msra.mxu0 %v726
    %754 = vmatpush.msra.mxu0 %v725
    %755 = vmatpush.msra.mxu0 %v724
    %756 = vmatpush.msra.mxu0 %v723
    %757 = vmatpush.msra.mxu0 %v722
    %758 = vmatpush.msra.mxu0 %v721
    %759 = vmatpush.msra.mxu0 %v720
    %760 = vmatpush.msra.mxu0 %v719
    %761 = vmatpush.msra.mxu0 %v718
    %762 = vmatpush.msra.mxu0 %v717
    %763 = vmatpush.msra.mxu0 %v716
    %764 = vmatpush.msra.mxu0 %v715
    %765 = vmatmul.f32.gmra.mxu0 %v712
    %v766 = vpop.f32.mrf.mxu0
    %v767 = vadd.f32 %v748, %v766
    %768 = vdwg.mxu0
    %769 = vmatpush.msra.mxu0 %v746
    %770 = vmatpush.msra.mxu0 %v745
    %771 = vmatpush.msra.mxu0 %v744
    %772 = vmatpush.msra.mxu0 %v743
    %773 = vmatpush.msra.mxu0 %v742
    %774 = vmatpush.msra.mxu0 %v741
    %775 = vmatpush.msra.mxu0 %v740
    %776 = vmatpush.msra.mxu0 %v739
    %777 = vmatpush.msra.mxu0 %v738
    %778 = vmatpush.msra.mxu0 %v737
    %779 = vmatpush.msra.mxu0 %v736
    %780 = vmatpush.msra.mxu0 %v735
    %781 = vmatpush.msra.mxu0 %v734
    %782 = vmatpush.msra.mxu0 %v733
    %783 = vmatpush.msra.mxu0 %v732
    %784 = vmatpush.msra.mxu0 %v731
    %785 = vmatmul.f32.gmra.mxu0 %v713
    %v786 = vpop.f32.mrf.mxu0
    %v787 = vadd.f32 %v767, %v786
    %788 = vdwg.mxu0
    %vm789 = vcmask 58368
    %790 = vst.msk [vmem:[#allocation3] sm:$0x3] %vm789, %v787
    %v791 = vld [vmem:[%s4] sm:$0xff]
    %v792 = vld [vmem:[%s4 + $0x8] sm:$0xff]
    %v793 = vld [vmem:[%s4 + $0x10] sm:$0xff]
    %v794 = vld [vmem:[%s4 + $0x18] sm:$0xff]
    %v795 = vld [vmem:[%s4 + $0x20] sm:$0xff]
    %v796 = vld [vmem:[%s4 + $0x28] sm:$0xff]
    %v797 = vld [vmem:[%s4 + $0x30] sm:$0xff]
    %v798 = vld [vmem:[%s4 + $0x38] sm:$0xff]
    %v799 = vld [vmem:[%s4 + $0x40] sm:$0xff]
    %v800 = vld [vmem:[%s4 + $0x48] sm:$0xff]
    %v801 = vld [vmem:[%s4 + $0x50] sm:$0xff]
    %v802 = vld [vmem:[%s4 + $0x58] sm:$0xff]
    %v803 = vld [vmem:[%s4 + $0x60] sm:$0xff]
    %v804 = vld [vmem:[%s4 + $0x68] sm:$0xff]
    %v805 = vld [vmem:[%s4 + $0x70] sm:$0xff]
    %v806 = vld [vmem:[%s4 + $0x78] sm:$0xff]
    %v807 = vld [vmem:[%s5 + $0x2] sm:$0x1]
    %v808 = vperm.slane %v807, 0
    %809 = vmatpush.msra.mxu0 %v806
    %810 = vmatpush.msra.mxu0 %v805
    %811 = vmatpush.msra.mxu0 %v804
    %812 = vmatpush.msra.mxu0 %v803
    %813 = vmatpush.msra.mxu0 %v802
    %814 = vmatpush.msra.mxu0 %v801
    %815 = vmatpush.msra.mxu0 %v800
    %816 = vmatpush.msra.mxu0 %v799
    %817 = vmatpush.msra.mxu0 %v798
    %818 = vmatpush.msra.mxu0 %v797
    %819 = vmatpush.msra.mxu0 %v796
    %820 = vmatpush.msra.mxu0 %v795
    %821 = vmatpush.msra.mxu0 %v794
    %822 = vmatpush.msra.mxu0 %v793
    %823 = vmatpush.msra.mxu0 %v792
    %824 = vmatpush.msra.mxu0 %v791
    %825 = vmatmul.f32.gmra.mxu0 %v714
    %v826 = vpop.f32.mrf.mxu0
    %v827 = vadd.f32 %v808, %v826
    %828 = vdwg.mxu0
    %vm829 = vcmask 189440
    %830 = vst.msk [vmem:[#allocation5] sm:$0x3] %vm829, %v827
    // Predicated region
    $region26: #{hcnn_dqn_forward.1} parent=1 // pred_check
      _
    $region27: #{hcnn_dqn_forward.1} parent=1 // pred_check_branch
      %832 = sbr.rel (0) target = $region29
    $region28: #{hcnn_dqn_forward.1} parent=1 // pred_region
      _
    $region29: #{hcnn_dqn_forward.1} parent=1 // pred_fallthru
      _
    // Predicated region
    $region30: #{hcnn_dqn_forward.1} parent=1 // pred_check
      _
    $region31: #{hcnn_dqn_forward.1} parent=1 // pred_check_branch
      %834 = sbr.rel (0) target = $region33
    $region32: #{hcnn_dqn_forward.1} parent=1 // pred_region
      _
    $region33: #{hcnn_dqn_forward.1} parent=1 // pred_fallthru
      _
    // Predicated region
    $region34: #{hcnn_dqn_forward.1} parent=1 // pred_check
      _
    $region35: #{hcnn_dqn_forward.1} parent=1 // pred_check_branch
      %836 = sbr.rel (0) target = $region37
    $region36: #{hcnn_dqn_forward.1} parent=1 // pred_region
      _
    $region37: #{hcnn_dqn_forward.1} parent=1 // pred_fallthru
      _
    // Predicated region
    $region38: #{hcnn_dqn_forward.1} parent=1 // pred_check
      _
    $region39: #{hcnn_dqn_forward.1} parent=1 // pred_check_branch
      %838 = sbr.rel (0) target = $region41
    $region40: #{hcnn_dqn_forward.1} parent=1 // pred_region
      %840 = vsyncadd [#allocation4], 0
      %s842 = sshll.u32 [#allocation3], 4
      %s843 = int_to_ptr.vmem [resolvable:$true] %s842
      %s844 = sshll.u32 %s9, 4
      %s845 = int_to_ptr.hbm [resolvable:$true] %s844
      %847 = dma.vmem_to_hbm [thread:$0]  %s843, 32, %s845, [#allocation4]
    $region41: #{hcnn_dqn_forward.1} parent=1 // pred_fallthru
      _
    // Predicated region
    $region42: #{hcnn_dqn_forward.1} parent=1 // pred_check
      _
    $region43: #{hcnn_dqn_forward.1} parent=1 // pred_check_branch
      %849 = sbr.rel (0) target = $region45
    $region44: #{hcnn_dqn_forward.1} parent=1 // pred_region
      %851 = vsyncadd [#allocation6], 0
      %s853 = sshll.u32 [#allocation5], 4
      %s854 = int_to_ptr.vmem [resolvable:$true] %s853
      %s855 = sshll.u32 %s10, 4
      %s856 = int_to_ptr.hbm [resolvable:$true] %s855
      %858 = dma.vmem_to_hbm [thread:$0]  %s854, 32, %s856, [#allocation6]
    $region45: #{hcnn_dqn_forward.1} parent=1 // pred_fallthru
      _
    // Predicated region
    $region46: #{hcnn_dqn_forward.1} parent=1 // pred_check
      _
    $region47: #{hcnn_dqn_forward.1} parent=1 // pred_check_branch
      %860 = sbr.rel (0) target = $region49
    $region48: #{hcnn_dqn_forward.1} parent=1 // pred_region
      _
    $region49: #{hcnn_dqn_forward.1} parent=1 // pred_fallthru
      _
    // Predicated region
    $region50: #{hcnn_dqn_forward.1} parent=1 // pred_check
      _
    $region51: #{hcnn_dqn_forward.1} parent=1 // pred_check_branch
      %862 = sbr.rel (0) target = $region53
    $region52: #{hcnn_dqn_forward.1} parent=1 // pred_region
      _
    $region53: #{hcnn_dqn_forward.1} parent=1 // pred_fallthru
      _
    // Predicated region
    $region54: #{hcnn_dqn_forward.1} parent=1 // pred_check
      _
    $region55: #{hcnn_dqn_forward.1} parent=1 // pred_check_branch
      %864 = sbr.rel (0) target = $region57
    $region56: #{hcnn_dqn_forward.1} parent=1 // pred_region
      _
    $region57: #{hcnn_dqn_forward.1} parent=1 // pred_fallthru
      _
    // Predicated region
    $region58: #{hcnn_dqn_forward.1} parent=1 // pred_check
      _
    $region59: #{hcnn_dqn_forward.1} parent=1 // pred_check_branch
      %866 = sbr.rel (0) target = $region61
    $region60: #{hcnn_dqn_forward.1} parent=1 // pred_region
      %868 = dma.done [#allocation4], 32
    $region61: #{hcnn_dqn_forward.1} parent=1 // pred_fallthru
      _
    // Predicated region
    $region62: #{hcnn_dqn_forward.1} parent=1 // pred_check
      _
    $region63: #{hcnn_dqn_forward.1} parent=1 // pred_check_branch
      %870 = sbr.rel (0) target = $region65
    $region64: #{hcnn_dqn_forward.1} parent=1 // pred_region
      %872 = dma.done [#allocation6], 32
    $region65: #{hcnn_dqn_forward.1} parent=1 // pred_fallthru
      _
    %873 = vsyncpa [#allocation4], 1
    %874 = vsyncpa [#allocation6], 1

</llo_original>
